<compile_context>
chip_gen: v5e
topology: v5e:2x2
jax: 0.10.0
libtpu: 0.0.40
codegen_flags: <defaults>
</compile_context>

<pallas_src>
import jax
import jax.numpy as jnp
from jax.experimental import pallas as pl
from jax.experimental.pallas import tpu as pltpu

_EPS = 1e-6          # PyTorch default eps for pairwise_distance / triplet loss
_MARGIN = 128.0
_TILE_N = 8192       # max rows per grid step
_MIN_SPLIT_ROWS = 128                     # only force a 2-way split if each half >= this
_VMEM_INPUT_BUDGET = 24 * 1024 * 1024     # double-buffered bytes across the 3 inputs
_VMEM_LIMIT_BYTES = 40 * 1024 * 1024      # explicit scoped-VMEM limit (v5e default is 16 MiB)


def _make_triplet_kernel(n_valid: int, tile_n: int):
    """Kernel closure over static row count / tile size."""

    def kernel(a1_ref, a2_ref, v_ref, hsum_ref, mask_ref):
        # Inputs: (tile_n, D).  Cast to f32 for accumulation (v5e has no bf16 VPU).
        a1 = a1_ref[...].astype(jnp.float32)   # audio1_enc
        a2 = a2_ref[...].astype(jnp.float32)   # audio2_enc
        v = v_ref[...].astype(jnp.float32)     # video_enc

        # torch TripletMarginLoss convention: ||anchor - positive + eps||, anchor = video.
        diff1 = v - a1 + _EPS
        diff2 = v - a2 + _EPS

        # Row-wise squared L2 norms: 2 VALU squarings + 2 XLU lane-reduces total.
        sq1 = jnp.sum(diff1 * diff1, axis=-1, keepdims=True)   # (tile_n, 1)
        sq2 = jnp.sum(diff2 * diff2, axis=-1, keepdims=True)   # (tile_n, 1)

        # Only the hinge needs actual distances (2 sqrts, EUP slot).
        d_ap = jnp.sqrt(sq1)
        d_an = jnp.sqrt(sq2)

        hinge = jnp.maximum(d_ap - d_an + _MARGIN, 0.0)         # (tile_n, 1)

        # Mask padded rows of the last (partial) tile BEFORE reducing so that
        # undefined out-of-bounds input rows can never contaminate the sum.
        row0 = pl.program_id(0) * tile_n
        rows = jax.lax.broadcasted_iota(jnp.int32, (tile_n, 1), 0) + row0
        hinge = jnp.where(rows < n_valid, hinge, 0.0)

        # Per-tile hinge partial sum, written as a full aligned (8,128) block
        # (disjoint per grid step -> grid axis stays "parallel").
        hsum_ref[...] = jnp.broadcast_to(jnp.sum(hinge), (8, 128))

        # (dist1 < dist2) <=> (sq1 < sq2) since sqrt is monotone on >= 0.
        # Reusing ||v - a + eps||^2 instead of ||a - v + eps||^2 differs by
        # 4*eps*sum(a-v) (~couple f32 ulps) -> only knife-edge ties can flip.
        mask_ref[...] = (sq1 < sq2).astype(jnp.float32)

    return kernel


def _choose_tile(n: int, d: int, itemsize: int) -> int:
    """Pick rows-per-tile: big (amortize step overhead), VMEM-safe, >=2 steps when possible."""
    rows_cap = _VMEM_INPUT_BUDGET // (3 * 2 * d * itemsize)   # 3 inputs, double-buffered
    rows_cap = max(16, (rows_cap // 16) * 16)
    tile_cap = min(_TILE_N, rows_cap)
    if n > tile_cap:
        return tile_cap
    if n >= 2 * _MIN_SPLIT_ROWS:
        # Force >= 2 grid steps so both TensorCores (v7x) get work.
        half = -(-n // 2)
        return min(tile_cap, ((half + 15) // 16) * 16)
    return n   # tiny N: single full-array block (always a legal block shape)


@jax.jit
def triplet_loss(audio1_enc, audio2_enc, video_enc):
    """Returns (loss_scalar, mask_vector) exactly like Loss.forward."""
    assert audio1_enc.shape == audio2_enc.shape == video_enc.shape
    assert audio1_enc.ndim == 2
    n, d = audio1_enc.shape
    itemsize = jnp.dtype(audio1_enc.dtype).itemsize

    tile_n = _choose_tile(n, d, itemsize)
    num_tiles = -(-n // tile_n)
    n_pad = num_tiles * tile_n

    in_spec = pl.BlockSpec((tile_n, d), lambda i: (i, 0))

    hsum_blocks, mask_rows = pl.pallas_call(
        _make_triplet_kernel(n, tile_n),
        grid=(num_tiles,),
        in_specs=[in_spec, in_spec, in_spec],
        out_specs=(
            pl.BlockSpec((8, 128), lambda i: (i, 0)),       # per-tile hinge partial sum
            pl.BlockSpec((tile_n, 1), lambda i: (i, 0)),    # per-row mask
        ),
        out_shape=(
            jax.ShapeDtypeStruct((num_tiles * 8, 128), jnp.float32),
            jax.ShapeDtypeStruct((n_pad, 1), jnp.float32),
        ),
        compiler_params=pltpu.CompilerParams(
            dimension_semantics=("parallel",),      # disjoint output blocks per step
            vmem_limit_bytes=_VMEM_LIMIT_BYTES,
        ),
    )(audio1_enc, audio2_enc, video_enc)

    # Each tile's partial sum was broadcast into its (8,128) block; read one copy.
    partials = hsum_blocks[0::8, 0]                 # (num_tiles,)
    # reduction='mean' (the extra .mean() in forward is a no-op on a scalar).
    loss = jnp.sum(partials) * (1.0 / n)
    # Padded rows of the last partial tile hold garbage -> slice before returning.
    mask = mask_rows[:n, 0]
    return loss, mask


def _reference(a1, a2, v):
    """Pure-JAX reference with torch-faithful formulas."""
    d_ap = jnp.sqrt(jnp.sum((v - a1 + _EPS) ** 2, axis=-1))
    d_an = jnp.sqrt(jnp.sum((v - a2 + _EPS) ** 2, axis=-1))
    loss = jnp.mean(jnp.maximum(d_ap - d_an + _MARGIN, 0.0))
    dist1 = jnp.sqrt(jnp.sum((a1 - v + _EPS) ** 2, axis=-1))
    dist2 = jnp.sqrt(jnp.sum((a2 - v + _EPS) ** 2, axis=-1))
    mask = (dist1 < dist2).astype(jnp.float32)
    return loss, mask


if __name__ == "__main__":
    key = jax.random.PRNGKey(0)
    keys = jax.random.split(key, 9)
    D = 128

    # Case 1: small shapes consistent with the module (flat (N, D) embeddings).
    N = 8
    a1 = jax.random.normal(keys[0], (N, D), dtype=jnp.float32)
    a2 = jax.random.normal(keys[1], (N, D), dtype=jnp.float32)
    v = jax.random.normal(keys[2], (N, D), dtype=jnp.float32)

    loss, mask = jax.block_until_ready(triplet_loss(a1, a2, v))
    l_ref, m_ref = _reference(a1, a2, v)
    assert loss.shape == () and bool(jnp.isfinite(loss))
    assert mask.shape == (N,)
    assert bool(jnp.all((mask == 0.0) | (mask == 1.0)))
    assert abs(float(loss) - float(l_ref)) <= 1e-3 * max(1.0, abs(float(l_ref)))
    assert int(jnp.sum(mask != m_ref)) == 0

    # Case 2: tiled path — 2-step parallel grid with a partial (masked) last tile.
    N2 = 2500
    a1b = jax.random.normal(keys[3], (N2, D), dtype=jnp.float32)
    a2b = jax.random.normal(keys[4], (N2, D), dtype=jnp.float32)
    vb = jax.random.normal(keys[5], (N2, D), dtype=jnp.float32)

    loss2, mask2 = jax.block_until_ready(triplet_loss(a1b, a2b, vb))
    l2_ref, m2_ref = _reference(a1b, a2b, vb)
    assert loss2.shape == () and bool(jnp.isfinite(loss2))
    assert mask2.shape == (N2,)
    assert abs(float(loss2) - float(l2_ref)) <= 1e-3 * max(1.0, abs(float(l2_ref)))
    # Allow a couple of knife-edge ties (squared vs sqrt'd comparison, fp order).
    assert int(jnp.sum(mask2 != m2_ref)) <= 2

    # Case 3: bf16 inputs passed straight through (kernel upcasts to f32 internally).
    N3 = 256
    a1c = jax.random.normal(keys[6], (N3, D), dtype=jnp.float32).astype(jnp.bfloat16)
    a2c = jax.random.normal(keys[7], (N3, D), dtype=jnp.float32).astype(jnp.bfloat16)
    vc = jax.random.normal(keys[8], (N3, D), dtype=jnp.float32).astype(jnp.bfloat16)

    loss3, mask3 = jax.block_until_ready(triplet_loss(a1c, a2c, vc))
    l3_ref, m3_ref = _reference(a1c.astype(jnp.float32),
                                a2c.astype(jnp.float32),
                                vc.astype(jnp.float32))
    assert loss3.shape == () and bool(jnp.isfinite(loss3))
    assert mask3.shape == (N3,)
    assert abs(float(loss3) - float(l3_ref)) <= 1e-3 * max(1.0, abs(float(l3_ref)))
    assert int(jnp.sum(mask3 != m3_ref)) <= 2

    print("KERNEL_OK")
</pallas_src>

<mosaic_0001>
module attributes {stable_mosaic.version = 11 : i64} {
  func.func @kernel(%arg0: i32, %arg1: memref<8x128xf32, #tpu.memory_space<vmem>>, %arg2: memref<8x128xf32, #tpu.memory_space<vmem>>, %arg3: memref<8x128xf32, #tpu.memory_space<vmem>>, %arg4: memref<8x128xf32, #tpu.memory_space<vmem>>, %arg5: memref<8x1xf32, #tpu.memory_space<vmem>>) attributes {dimension_semantics = [#tpu.dimension_semantics<parallel>], iteration_bounds = array<i64: 1>, scalar_prefetch = 0 : i64, scratch_operands = 0 : i64, tpu.core_type = #tpu.core_type<tc>, window_params = [{transform_indices = @transform_0, window_bounds = array<i64: 8, 128>}, {transform_indices = @transform_1, window_bounds = array<i64: 8, 128>}, {transform_indices = @transform_2, window_bounds = array<i64: 8, 128>}, {transform_indices = @transform_3, window_bounds = array<i64: 8, 128>}, {transform_indices = @transform_4, window_bounds = array<i64: 8, 1>}]} {
    %c0 = arith.constant 0 : index
    %c0_0 = arith.constant 0 : index
    %0 = vector.load %arg1[%c0, %c0_0] : memref<8x128xf32, #tpu.memory_space<vmem>>, vector<8x128xf32>
    %c0_1 = arith.constant 0 : index
    %c0_2 = arith.constant 0 : index
    %1 = vector.load %arg2[%c0_1, %c0_2] : memref<8x128xf32, #tpu.memory_space<vmem>>, vector<8x128xf32>
    %c0_3 = arith.constant 0 : index
    %c0_4 = arith.constant 0 : index
    %2 = vector.load %arg3[%c0_3, %c0_4] : memref<8x128xf32, #tpu.memory_space<vmem>>, vector<8x128xf32>
    %3 = arith.subf %2, %0 : vector<8x128xf32>
    %cst = arith.constant 9.99999997E-7 : f32
    %4 = vector.broadcast %cst : f32 to vector<8x128xf32>
    %5 = arith.addf %3, %4 : vector<8x128xf32>
    %6 = arith.subf %2, %1 : vector<8x128xf32>
    %cst_5 = arith.constant 9.99999997E-7 : f32
    %7 = vector.broadcast %cst_5 : f32 to vector<8x128xf32>
    %8 = arith.addf %6, %7 : vector<8x128xf32>
    %9 = arith.mulf %5, %5 : vector<8x128xf32>
    %cst_6 = arith.constant dense<0.000000e+00> : vector<8xf32>
    %10 = vector.multi_reduction <add>, %9, %cst_6 [1] : vector<8x128xf32> to vector<8xf32>
    %11 = vector.shape_cast %10 : vector<8xf32> to vector<8x1xf32>
    %12 = arith.mulf %8, %8 : vector<8x128xf32>
    %cst_7 = arith.constant dense<0.000000e+00> : vector<8xf32>
    %13 = vector.multi_reduction <add>, %12, %cst_7 [1] : vector<8x128xf32> to vector<8xf32>
    %14 = vector.shape_cast %13 : vector<8xf32> to vector<8x1xf32>
    %15 = math.sqrt %11 : vector<8x1xf32>
    %16 = math.sqrt %14 : vector<8x1xf32>
    %17 = arith.subf %15, %16 : vector<8x1xf32>
    %cst_8 = arith.constant 1.280000e+02 : f32
    %18 = vector.broadcast %cst_8 : f32 to vector<8x1xf32>
    %19 = arith.addf %17, %18 : vector<8x1xf32>
    %cst_9 = arith.constant 0.000000e+00 : f32
    %20 = vector.broadcast %cst_9 : f32 to vector<8x1xf32>
    %21 = arith.maximumf %19, %20 : vector<8x1xf32>
    %c8_i32 = arith.constant 8 : i32
    %22 = arith.muli %arg0, %c8_i32 : i32
    %23 = tpu.iota {dimensions = array<i32: 0>} : vector<8x1xi32>
    %24 = vector.broadcast %22 : i32 to vector<8x1xi32>
    %25 = arith.addi %23, %24 : vector<8x1xi32>
    %c8_i32_10 = arith.constant 8 : i32
    %26 = vector.broadcast %c8_i32_10 : i32 to vector<8x1xi32>
    %27 = arith.cmpi slt, %25, %26 : vector<8x1xi32>
    %cst_11 = arith.constant 0.000000e+00 : f32
    %28 = vector.broadcast %cst_11 : f32 to vector<8x1xf32>
    %29 = arith.select %27, %21, %28 : vector<8x1xi1>, vector<8x1xf32>
    %30 = vector.shape_cast %29 : vector<8x1xf32> to vector<1x8x1xf32>
    %cst_12 = arith.constant dense<0.000000e+00> : vector<1xf32>
    %31 = vector.multi_reduction <add>, %30, %cst_12 [1, 2] : vector<1x8x1xf32> to vector<1xf32>
    %32 = vector.shape_cast %31 : vector<1xf32> to vector<1x1x1xf32>
    %33 = vector.extract %32[0, 0, 0] : f32 from vector<1x1x1xf32>
    %34 = vector.broadcast %33 : f32 to vector<8x128xf32>
    %c0_13 = arith.constant 0 : index
    %c0_14 = arith.constant 0 : index
    %35 = vector.load %arg4[%c0_13, %c0_14] : memref<8x128xf32, #tpu.memory_space<vmem>>, vector<8x128xf32>
    tpu.vector_store %arg4[%c0_13, %c0_14], %34 {strides = array<i32>} : memref<8x128xf32, #tpu.memory_space<vmem>>, vector<8x128xf32>,
    %36 = arith.cmpf olt, %11, %14 : vector<8x1xf32>
    %37 = arith.extui %36 : vector<8x1xi1> to vector<8x1xi32>
    %38 = arith.sitofp %37 : vector<8x1xi32> to vector<8x1xf32>
    %c0_15 = arith.constant 0 : index
    %c0_16 = arith.constant 0 : index
    %39 = vector.load %arg5[%c0_15, %c0_16] : memref<8x1xf32, #tpu.memory_space<vmem>>, vector<8x1xf32>
    tpu.vector_store %arg5[%c0_15, %c0_16], %38 {strides = array<i32>} : memref<8x1xf32, #tpu.memory_space<vmem>>, vector<8x1xf32>,
    return
  }
  func.func @transform_0(%arg0: i32) -> (i32, i32) {
    %c0_i32 = arith.constant 0 : i32
    %c0_i32_0 = arith.constant 0 : i32
    return %arg0, %c0_i32 : i32, i32
  }
  func.func @transform_1(%arg0: i32) -> (i32, i32) {
    %c0_i32 = arith.constant 0 : i32
    %c0_i32_0 = arith.constant 0 : i32
    return %arg0, %c0_i32 : i32, i32
  }
  func.func @transform_2(%arg0: i32) -> (i32, i32) {
    %c0_i32 = arith.constant 0 : i32
    %c0_i32_0 = arith.constant 0 : i32
    return %arg0, %c0_i32 : i32, i32
  }
  func.func @transform_3(%arg0: i32) -> (i32, i32) {
    %c0_i32 = arith.constant 0 : i32
    %c0_i32_0 = arith.constant 0 : i32
    return %arg0, %c0_i32 : i32, i32
  }
  func.func @transform_4(%arg0: i32) -> (i32, i32) {
    %c0_i32 = arith.constant 0 : i32
    %c0_i32_0 = arith.constant 0 : i32
    return %arg0, %c0_i32 : i32, i32
  }
}

</mosaic_0001>

<llo_original>
// kernel: triplet_loss.1
$region0: #{triplet_loss.1}
  #allocation0 [shape = 'u32[]', space=smem, size = 0x4, offset = 0x4, fixed_abs, tag = 'smem constant byte address 0x4 - core index']
  #allocation1 [shape = 'u32[72,128]{1,0:T(1,128)}', space=vmem, size = 0x9000, scoped, tag = 'internal scratch']
  %s0 = inlined_call_operand.hbm [shape: f32[8,128], index: 0, kind: input, shape index: {}]
  %s1 = inlined_call_operand.hbm [shape: f32[8,128], index: 1, kind: input, shape index: {}]
  %s2 = inlined_call_operand.hbm [shape: f32[8,128], index: 2, kind: input, shape index: {}]
  %s3 = inlined_call_operand.vmem [shape: f32[8,128], index: 3, kind: output, shape index: {0}]
  %s4 = inlined_call_operand.vmem [shape: f32[8,1], index: 4, kind: output, shape index: {1}]
  %5 = xla_tuple %s3, %s4
  %s6 = sld [smem:[#allocation0]]
  $region42: #{triplet_loss.1} parent=0
    _
  %s8 = ssub.s32 1, %s6
  %s9 = scalar_select 0, %s8, %s6
  $region1: #{triplet_loss.1} parent=0
    #allocation2 [shape = 'u8[4096]{0}', space=vmem, size = 0x1000, scoped, tag = 'input window, operand 0, single buffered']
    #allocation3 [shape = 's32[1]{0}', space=sflag, size = 0x4, scoped, tag = 'scoped memory for triplet_loss.1']
    #allocation4 [shape = 'u8[4096]{0}', space=vmem, size = 0x1000, scoped, tag = 'input window, operand 1, single buffered']
    #allocation5 [shape = 's32[1]{0}', space=sflag, size = 0x4, scoped, tag = 'scoped memory for triplet_loss.1']
    #allocation6 [shape = 'u8[4096]{0}', space=vmem, size = 0x1000, scoped, tag = 'input window, operand 2, single buffered']
    %10 = vsyncpa [#allocation3], 0
    %11 = vsyncpa [#allocation5], 0
    // Predicated region
    $region2: #{triplet_loss.1} parent=1 // pred_check
      _
    $region3: #{triplet_loss.1} parent=1 // pred_check_branch
      %13 = sbr.rel (0) target = $region5
    $region4: #{triplet_loss.1} parent=1 // pred_region
      %15 = vsyncadd [#allocation3], 0
      %s17 = sshll.u32 %s0, 4
      %s18 = int_to_ptr.hbm [resolvable:$true] %s17
      %s19 = sshll.u32 [#allocation2], 4
      %s20 = int_to_ptr.vmem [resolvable:$true] %s19
      %22 = dma.hbm_to_vmem [thread:$0]  %s18, 128, %s20, [#allocation3]
    $region5: #{triplet_loss.1} parent=1 // pred_fallthru
      _
    // Predicated region
    $region6: #{triplet_loss.1} parent=1 // pred_check
      _
    $region7: #{triplet_loss.1} parent=1 // pred_check_branch
      %24 = sbr.rel (0) target = $region9
    $region8: #{triplet_loss.1} parent=1 // pred_region
      %26 = vsyncadd [#allocation5], 0
      %s28 = sshll.u32 %s1, 4
      %s29 = int_to_ptr.hbm [resolvable:$true] %s28
      %s30 = sshll.u32 [#allocation4], 4
      %s31 = int_to_ptr.vmem [resolvable:$true] %s30
      %33 = dma.hbm_to_vmem [thread:$0]  %s29, 128, %s31, [#allocation5]
    $region9: #{triplet_loss.1} parent=1 // pred_fallthru
      _
    // Predicated region
    $region10: #{triplet_loss.1} parent=1 // pred_check
      _
    $region11: #{triplet_loss.1} parent=1 // pred_check_branch
      %35 = sbr.rel (0) target = $region13
    $region12: #{triplet_loss.1} parent=1 // pred_region
      %37 = vsyncadd [#allocation5], 0
      %s39 = sshll.u32 %s2, 4
      %s40 = int_to_ptr.hbm [resolvable:$true] %s39
      %s41 = sshll.u32 [#allocation6], 4
      %s42 = int_to_ptr.vmem [resolvable:$true] %s41
      %44 = dma.hbm_to_vmem [thread:$0]  %s40, 128, %s42, [#allocation5]
    $region13: #{triplet_loss.1} parent=1 // pred_fallthru
      _
    // Predicated region
    $region14: #{triplet_loss.1} parent=1 // pred_check
      _
    $region15: #{triplet_loss.1} parent=1 // pred_check_branch
      %46 = sbr.rel (0) target = $region17
    $region16: #{triplet_loss.1} parent=1 // pred_region
      %48 = dma.done [#allocation3], 128
    $region17: #{triplet_loss.1} parent=1 // pred_fallthru
      _
    // Predicated region
    $region18: #{triplet_loss.1} parent=1 // pred_check
      _
    $region19: #{triplet_loss.1} parent=1 // pred_check_branch
      %50 = sbr.rel (0) target = $region21
    $region20: #{triplet_loss.1} parent=1 // pred_region
      %52 = dma.done [#allocation5], 128
    $region21: #{triplet_loss.1} parent=1 // pred_fallthru
      _
    // Predicated region
    $region22: #{triplet_loss.1} parent=1 // pred_check
      _
    $region23: #{triplet_loss.1} parent=1 // pred_check_branch
      %54 = sbr.rel (0) target = $region25
    $region24: #{triplet_loss.1} parent=1 // pred_region
      %56 = dma.done [#allocation5], 128
    $region25: #{triplet_loss.1} parent=1 // pred_fallthru
      _
    %v57 = vld [vmem:[#allocation2] sm:$0xff]
    %v58 = vld [vmem:[#allocation4] sm:$0xff]
    %v59 = vld [vmem:[#allocation6] sm:$0xff]
    %v60 = vsub.f32 %v59, %v57
    %v61 = vadd.f32 %v60, 1e-06
    %v62 = vsub.f32 %v59, %v58
    %v63 = vadd.f32 %v62, 1e-06
    %v64 = vmul.f32 %v61, %v61
    %65 = vadd.xlane.f32.xlu0 %v64
    %v66 = vpop.xlane.xlu0 %65
    %v67 = vmul.f32 %v63, %v63
    %68 = vadd.xlane.f32.xlu0 %v67
    %v69 = vpop.xlane.xlu0 %68
    %v70 = vrsqrt.pop %v66
    %v71 = vmul.f32 %v70, %v66
    %v72 = vmul.f32 %v71, %v70
    %v73 = vmul.f32 0.5, %v72
    %v74 = vsub.f32 1.5, %v73
    %v75 = vmul.f32 %v70, %v74
    %v76 = vmul.f32 %v66, %v75
    %vm77 = vcmp.eq.f32.partialorder %v66, inf
    %v78 = vsel %vm77, %v66, %v76
    %vm79 = vcmp.eq.f32.partialorder %v66, 0.0
    %v80 = vand.u32 %v66, 2147483648
    %v81 = vsel %vm79, %v80, %v78
    %v82 = vrsqrt.pop %v69
    %v83 = vmul.f32 %v82, %v69
    %v84 = vmul.f32 %v83, %v82
    %v85 = vmul.f32 0.5, %v84
    %v86 = vsub.f32 1.5, %v85
    %v87 = vmul.f32 %v82, %v86
    %v88 = vmul.f32 %v69, %v87
    %vm89 = vcmp.eq.f32.partialorder %v69, inf
    %v90 = vsel %vm89, %v69, %v88
    %vm91 = vcmp.eq.f32.partialorder %v69, 0.0
    %v92 = vand.u32 %v69, 2147483648
    %v93 = vsel %vm91, %v92, %v90
    %v94 = vsub.f32 %v81, %v93
    %v95 = vadd.f32 %v94, 128.0
    %v96 = vmax.f32 %v95, 0.0
    %s97 = smul.u32 0, 8
    %v98 = vlaneseq
    %v99 = vshrl.u32 %v98, 7
    %v100 = vstv %s97
    %v101 = vadd.s32 %v99, %v100
    %vm102 = vcmp.lt.s32.totalorder %v101, 8
    %v103 = vsel %vm102, %v96, 0.0
    %vm104 = vcmask 7168
    %v105 = vsel %vm104, %v103, 0.0
    %106 = vadd.xlane.f32.xlu0 %v105
    %v107 = vpop.xlane.xlu0 %106
    %v108 = vrot.slane %v107, 4
    %v109 = vadd.f32 %v107, %v108
    %v110 = vrot.slane %v109, 2
    %v111 = vadd.f32 %v109, %v110
    %v112 = vrot.slane %v111, 1
    %v113 = vadd.f32 %v111, %v112
    %s114 = vtos %v113
    %v115 = vstv %s114
    %116 = vst [vmem:[%s3] sm:$0xff] %v115
    %vm117 = vcmp.lt.f32.partialorder %v66, %v69
    %v118 = vsel %vm117, 1, 0
    %v119 = vcvt.s32.f32 %v118
    %120 = vst.msk [vmem:[%s4] sm:$0xff] %vm104, %v119
    // Predicated region
    $region26: #{triplet_loss.1} parent=1 // pred_check
      _
    $region27: #{triplet_loss.1} parent=1 // pred_check_branch
      %122 = sbr.rel (0) target = $region29
    $region28: #{triplet_loss.1} parent=1 // pred_region
      _
    $region29: #{triplet_loss.1} parent=1 // pred_fallthru
      _
    // Predicated region
    $region30: #{triplet_loss.1} parent=1 // pred_check
      _
    $region31: #{triplet_loss.1} parent=1 // pred_check_branch
      %124 = sbr.rel (0) target = $region33
    $region32: #{triplet_loss.1} parent=1 // pred_region
      _
    $region33: #{triplet_loss.1} parent=1 // pred_fallthru
      _
    // Predicated region
    $region34: #{triplet_loss.1} parent=1 // pred_check
      _
    $region35: #{triplet_loss.1} parent=1 // pred_check_branch
      %126 = sbr.rel (0) target = $region37
    $region36: #{triplet_loss.1} parent=1 // pred_region
      _
    $region37: #{triplet_loss.1} parent=1 // pred_fallthru
      _
    // Predicated region
    $region38: #{triplet_loss.1} parent=1 // pred_check
      _
    $region39: #{triplet_loss.1} parent=1 // pred_check_branch
      %128 = sbr.rel (0) target = $region41
    $region40: #{triplet_loss.1} parent=1 // pred_region
      _
    $region41: #{triplet_loss.1} parent=1 // pred_fallthru
      _
    %129 = vsyncpa [#allocation3], 1
    %130 = vsyncpa [#allocation5], 1

</llo_original>
